<compile_context>
chip_gen: v7x
topology: tpu7x:2x2x1
jax: 0.10.0
libtpu: 0.0.40
codegen_flags: <defaults>
</compile_context>

<pallas_src>
import functools

import jax
import jax.numpy as jnp
from jax.experimental import pallas as pl
from jax.experimental.pallas import tpu as pltpu

_NEG = -1.0e30  # finite "minus infinity": keeps the online update NaN-free


def _smsq_kernel(xc_ref, xt_ref, out_ref, m_acc, s_acc, *,
                 inv_tau, rows_total, tile_rows, mask_rows):
    pid = pl.program_id(0)
    last = pl.num_programs(0) - 1

    @pl.when(pid == 0)
    def _init():
        m_acc[...] = jnp.full(m_acc.shape, _NEG, jnp.float32)
        s_acc[...] = jnp.zeros(s_acc.shape, jnp.float32)

    d = xc_ref[...] - xt_ref[...]                 # (T,128) VPU
    d2 = d * d
    # Pair the x/y coordinates of each point (adjacent lanes in the interleaved
    # layout) with one lane-rotate (XLU).  Only one lane parity holds the true
    # (x^2 + y^2); the other parity holds finite garbage that is masked out
    # once, in the finalize.
    z = (d2 + pltpu.roll(d2, shift=1, axis=1)) * inv_tau

    if mask_rows:
        # Only emitted when the last grid block is partial: rows past the end
        # of the aligned prefix carry unspecified data -> force them to _NEG
        # before they can touch the accumulators.
        row = jax.lax.broadcasted_iota(jnp.int32, z.shape, 0) + pid * tile_rows
        z = jnp.where(row < rows_total, z, _NEG)

    # One-exp elementwise online logsumexp (no per-step cross-lane reduce).
    m_old = m_acc[...]
    s_old = s_acc[...]
    e = jnp.exp(-jnp.abs(z - m_old))              # single EUP push per z-vreg
    m_acc[...] = jnp.maximum(m_old, z)
    s_acc[...] = jnp.where(z > m_old, s_old * e + 1.0, s_old + e)

    @pl.when(pid == last)
    def _finalize():
        # Runtime parity detection (one-time): a lane is a valid aggregation
        # lane iff its roll-partner is its x/y mate (lane ^ 1).  Robust to the
        # rotate-direction convention; each point is counted exactly once.
        lane = jax.lax.broadcasted_iota(jnp.int32, m_acc.shape, 1)
        valid = pltpu.roll(lane, shift=1, axis=1) == (lane ^ 1)
        m_all = jnp.where(valid, m_acc[...], _NEG)
        g = jnp.max(m_all)                                     # g >= 0
        s_tot = jnp.sum(s_acc[...] * jnp.exp(m_all - g))       # masked -> *0
        out_ref[0] = g
        out_ref[1] = s_tot


def smooth_max_sq_error_loss(Xc, Xt, tau: float = 1.0, *, tile_rows: int = 2048):
    """Pallas TPU implementation of SmoothMaxSquaredErrorLoss.forward.

    Xc, Xt: (N, 2) arrays. Returns a float32 scalar.
    """
    assert Xc.shape == Xt.shape and Xc.ndim == 2 and Xc.shape[1] == 2
    N = int(Xc.shape[0])
    assert N >= 1, "logsumexp over an empty set is -inf"
    tau = float(tau)
    inv_tau = 1.0 / tau

    xc = jnp.asarray(Xc, jnp.float32)
    xt = jnp.asarray(Xt, jnp.float32)

    total = 2 * N
    rows = total // 128          # full lane-dense rows handled by the kernel
    n_kernel = rows * 64         # points handled by the kernel (64 per row)

    lse_parts = []

    # Tail (< 64 points): plain XLA in the wrapper.  Avoids a full-buffer pad
    # copy just to reach a 128-lane multiple.
    if n_kernel < N:
        d_tail = xc[n_kernel:] - xt[n_kernel:]
        sq_tail = jnp.sum(d_tail * d_tail, axis=1)
        lse_parts.append(jax.nn.logsumexp(sq_tail * inv_tau))

    if rows > 0:
        xc2 = xc.reshape(-1)[: rows * 128].reshape(rows, 128)
        xt2 = xt.reshape(-1)[: rows * 128].reshape(rows, 128)

        if rows <= tile_rows:
            T = rows                              # single full-array block
        else:
            T = max(8, (tile_rows // 8) * 8)      # big lane-dense tiles
        grid = (pl.cdiv(rows, T),)
        mask_rows = (rows % T) != 0               # partial last block only

        kernel = functools.partial(
            _smsq_kernel,
            inv_tau=inv_tau,
            rows_total=rows,
            tile_rows=T,
            mask_rows=mask_rows,
        )

        out = pl.pallas_call(
            kernel,
            out_shape=jax.ShapeDtypeStruct((2,), jnp.float32),  # (max, sum)
            grid=grid,
            in_specs=[
                pl.BlockSpec((T, 128), lambda i: (i, 0)),
                pl.BlockSpec((T, 128), lambda i: (i, 0)),
            ],
            out_specs=pl.BlockSpec(memory_space=pltpu.MemorySpace.SMEM),
            scratch_shapes=[
                pltpu.VMEM((T, 128), jnp.float32),   # running max
                pltpu.VMEM((T, 128), jnp.float32),   # running rescaled sum
            ],
            compiler_params=pltpu.CompilerParams(
                dimension_semantics=("arbitrary",),
                vmem_limit_bytes=32 * 1024 * 1024,
            ),
        )(xc2, xt2)
        lse_parts.append(out[0] + jnp.log(out[1]))

    if len(lse_parts) == 2:
        lse = jnp.logaddexp(lse_parts[0], lse_parts[1])
    else:
        lse = lse_parts[0]
    return tau * lse


def _reference(Xc, Xt, tau):
    sq = jnp.sum((Xc - Xt) ** 2, axis=1)
    return tau * jax.scipy.special.logsumexp(sq / tau, axis=0)


if __name__ == "__main__":
    key = jax.random.PRNGKey(0)
    k1, k2, k3, k4, k5, k6 = jax.random.split(key, 6)

    # Case 1: N not a multiple of 64 -> kernel on the aligned prefix (12 rows,
    # single block) + XLA tail of 9 points, merged with logaddexp.
    Xc = jax.random.normal(k1, (777, 2), dtype=jnp.float32)
    Xt = jax.random.normal(k2, (777, 2), dtype=jnp.float32)
    loss1 = jax.block_until_ready(smooth_max_sq_error_loss(Xc, Xt, tau=0.5))
    ref1 = _reference(Xc, Xt, 0.5)
    assert jnp.allclose(loss1, ref1, rtol=1e-5, atol=1e-5), (loss1, ref1)

    # Case 2: same data, tiny tile -> multi-step grid with a partial last
    # block; exercises init / online accumulate / row masking / finalize.
    loss2 = jax.block_until_ready(
        smooth_max_sq_error_loss(Xc, Xt, tau=0.5, tile_rows=8))
    ref2 = _reference(Xc, Xt, 0.5)
    assert jnp.allclose(loss2, ref2, rtol=1e-5, atol=1e-5), (loss2, ref2)

    # Case 3: exactly one lane-dense row, no tail, sharp temperature.
    Xc3 = jax.random.normal(k3, (64, 2), dtype=jnp.float32)
    Xt3 = jax.random.normal(k4, (64, 2), dtype=jnp.float32)
    loss3 = jax.block_until_ready(smooth_max_sq_error_loss(Xc3, Xt3, tau=0.1))
    ref3 = _reference(Xc3, Xt3, 0.1)
    assert jnp.allclose(loss3, ref3, rtol=1e-5, atol=1e-5), (loss3, ref3)

    # Case 4: tiny N (< 64 points) -> pure wrapper tail path (matches the torch
    # docstring example shape).
    Xc4 = jax.random.normal(k5, (10, 2), dtype=jnp.float32)
    Xt4 = jax.random.normal(k6, (10, 2), dtype=jnp.float32)
    loss4 = jax.block_until_ready(smooth_max_sq_error_loss(Xc4, Xt4, tau=0.1))
    ref4 = _reference(Xc4, Xt4, 0.1)
    assert jnp.allclose(loss4, ref4, rtol=1e-5, atol=1e-5), (loss4, ref4)

    print("KERNEL_OK")
</pallas_src>

<mosaic_0001>
module attributes {stable_mosaic.version = 11 : i64} {
  func.func @_smsq_kernel(%arg0: i32, %arg1: memref<12x128xf32, #tpu.memory_space<vmem>>, %arg2: memref<12x128xf32, #tpu.memory_space<vmem>>, %arg3: memref<2xf32, #tpu.memory_space<smem>>, %arg4: memref<12x128xf32, #tpu.memory_space<vmem>>, %arg5: memref<12x128xf32, #tpu.memory_space<vmem>>) attributes {dimension_semantics = [#tpu.dimension_semantics<arbitrary>], iteration_bounds = array<i64: 1>, scalar_prefetch = 0 : i64, scratch_operands = 2 : i64, tpu.core_type = #tpu.core_type<tc>, window_params = [{transform_indices = @transform_0, window_bounds = array<i64: 12, 128>}, {transform_indices = @transform_1, window_bounds = array<i64: 12, 128>}, {transform_indices = @transform_2, window_bounds = array<i64: 2>}]} {
    %c0_i32 = arith.constant 0 : i32
    %0 = arith.cmpi eq, %arg0, %c0_i32 : i32
    %1 = arith.extui %0 : i1 to i32
    %c0_i32_0 = arith.constant 0 : i32
    %2 = arith.cmpi ne, %1, %c0_i32_0 : i32
    scf.if %2 {
      %cst_16 = arith.constant -1.000000e+30 : f32
      %30 = vector.broadcast %cst_16 : f32 to vector<12x128xf32>
      %c0_17 = arith.constant 0 : index
      %c0_18 = arith.constant 0 : index
      %31 = vector.load %arg4[%c0_17, %c0_18] : memref<12x128xf32, #tpu.memory_space<vmem>>, vector<12x128xf32>
      tpu.vector_store %arg4[%c0_17, %c0_18], %30 {strides = array<i32>} : memref<12x128xf32, #tpu.memory_space<vmem>>, vector<12x128xf32>,
      %cst_19 = arith.constant 0.000000e+00 : f32
      %32 = vector.broadcast %cst_19 : f32 to vector<12x128xf32>
      %c0_20 = arith.constant 0 : index
      %c0_21 = arith.constant 0 : index
      %33 = vector.load %arg5[%c0_20, %c0_21] : memref<12x128xf32, #tpu.memory_space<vmem>>, vector<12x128xf32>
      tpu.vector_store %arg5[%c0_20, %c0_21], %32 {strides = array<i32>} : memref<12x128xf32, #tpu.memory_space<vmem>>, vector<12x128xf32>,
    } else {
    }
    %c0 = arith.constant 0 : index
    %c0_1 = arith.constant 0 : index
    %3 = vector.load %arg1[%c0, %c0_1] : memref<12x128xf32, #tpu.memory_space<vmem>>, vector<12x128xf32>
    %c0_2 = arith.constant 0 : index
    %c0_3 = arith.constant 0 : index
    %4 = vector.load %arg2[%c0_2, %c0_3] : memref<12x128xf32, #tpu.memory_space<vmem>>, vector<12x128xf32>
    %5 = arith.subf %3, %4 : vector<12x128xf32>
    %6 = arith.mulf %5, %5 : vector<12x128xf32>
    %c1_i32 = arith.constant 1 : i32
    %7 = tpu.dynamic_rotate %6 by %c1_i32 dim 1 : vector<12x128xf32>, i32 -> vector<12x128xf32>
    %8 = arith.addf %6, %7 : vector<12x128xf32>
    %cst = arith.constant 2.000000e+00 : f32
    %9 = vector.broadcast %cst : f32 to vector<12x128xf32>
    %10 = arith.mulf %8, %9 : vector<12x128xf32>
    %c0_4 = arith.constant 0 : index
    %c0_5 = arith.constant 0 : index
    %11 = vector.load %arg4[%c0_4, %c0_5] : memref<12x128xf32, #tpu.memory_space<vmem>>, vector<12x128xf32>
    %c0_6 = arith.constant 0 : index
    %c0_7 = arith.constant 0 : index
    %12 = vector.load %arg5[%c0_6, %c0_7] : memref<12x128xf32, #tpu.memory_space<vmem>>, vector<12x128xf32>
    %13 = arith.subf %10, %11 : vector<12x128xf32>
    %14 = math.absf %13 : vector<12x128xf32>
    %cst_8 = arith.constant 0.000000e+00 : f32
    %15 = vector.broadcast %cst_8 : f32 to vector<12x128xf32>
    %16 = arith.subf %15, %14 : vector<12x128xf32>
    %17 = math.exp %16 : vector<12x128xf32>
    %18 = arith.maximumf %11, %10 : vector<12x128xf32>
    %c0_9 = arith.constant 0 : index
    %c0_10 = arith.constant 0 : index
    %19 = vector.load %arg4[%c0_9, %c0_10] : memref<12x128xf32, #tpu.memory_space<vmem>>, vector<12x128xf32>
    tpu.vector_store %arg4[%c0_9, %c0_10], %18 {strides = array<i32>} : memref<12x128xf32, #tpu.memory_space<vmem>>, vector<12x128xf32>,
    %20 = arith.cmpf ogt, %10, %11 : vector<12x128xf32>
    %21 = arith.mulf %12, %17 : vector<12x128xf32>
    %cst_11 = arith.constant 1.000000e+00 : f32
    %22 = vector.broadcast %cst_11 : f32 to vector<12x128xf32>
    %23 = arith.addf %21, %22 : vector<12x128xf32>
    %24 = arith.addf %12, %17 : vector<12x128xf32>
    %25 = arith.select %20, %23, %24 : vector<12x128xi1>, vector<12x128xf32>
    %c0_12 = arith.constant 0 : index
    %c0_13 = arith.constant 0 : index
    %26 = vector.load %arg5[%c0_12, %c0_13] : memref<12x128xf32, #tpu.memory_space<vmem>>, vector<12x128xf32>
    tpu.vector_store %arg5[%c0_12, %c0_13], %25 {strides = array<i32>} : memref<12x128xf32, #tpu.memory_space<vmem>>, vector<12x128xf32>,
    %c0_i32_14 = arith.constant 0 : i32
    %27 = arith.cmpi eq, %arg0, %c0_i32_14 : i32
    %28 = arith.extui %27 : i1 to i32
    %c0_i32_15 = arith.constant 0 : i32
    %29 = arith.cmpi ne, %28, %c0_i32_15 : i32
    scf.if %29 {
      %30 = tpu.iota {dimensions = array<i32: 1>} : vector<12x128xi32>
      %c1_i32_16 = arith.constant 1 : i32
      %31 = tpu.dynamic_rotate %30 by %c1_i32_16 dim 1 : vector<12x128xi32>, i32 -> vector<12x128xi32>
      %c1_i32_17 = arith.constant 1 : i32
      %32 = vector.broadcast %c1_i32_17 : i32 to vector<12x128xi32>
      %33 = arith.xori %30, %32 : vector<12x128xi32>
      %34 = arith.cmpi eq, %31, %33 : vector<12x128xi32>
      %c0_18 = arith.constant 0 : index
      %c0_19 = arith.constant 0 : index
      %35 = vector.load %arg4[%c0_18, %c0_19] : memref<12x128xf32, #tpu.memory_space<vmem>>, vector<12x128xf32>
      %cst_20 = arith.constant -1.000000e+30 : f32
      %36 = vector.broadcast %cst_20 : f32 to vector<12x128xf32>
      %37 = arith.select %34, %35, %36 : vector<12x128xi1>, vector<12x128xf32>
      %38 = vector.shape_cast %37 : vector<12x128xf32> to vector<1x12x128xf32>
      %cst_21 = arith.constant dense<0xFF800000> : vector<1xf32>
      %39 = vector.multi_reduction <maximumf>, %38, %cst_21 [1, 2] : vector<1x12x128xf32> to vector<1xf32>
      %40 = vector.shape_cast %39 : vector<1xf32> to vector<1x1x1xf32>
      %41 = vector.extract %40[0, 0, 0] : f32 from vector<1x1x1xf32>
      %c0_22 = arith.constant 0 : index
      %c0_23 = arith.constant 0 : index
      %42 = vector.load %arg5[%c0_22, %c0_23] : memref<12x128xf32, #tpu.memory_space<vmem>>, vector<12x128xf32>
      %43 = vector.broadcast %41 : f32 to vector<12x128xf32>
      %44 = arith.subf %37, %43 : vector<12x128xf32>
      %45 = math.exp %44 : vector<12x128xf32>
      %46 = arith.mulf %42, %45 : vector<12x128xf32>
      %47 = vector.shape_cast %46 : vector<12x128xf32> to vector<1x12x128xf32>
      %cst_24 = arith.constant dense<0.000000e+00> : vector<1xf32>
      %48 = vector.multi_reduction <add>, %47, %cst_24 [1, 2] : vector<1x12x128xf32> to vector<1xf32>
      %49 = vector.shape_cast %48 : vector<1xf32> to vector<1x1x1xf32>
      %50 = vector.extract %49[0, 0, 0] : f32 from vector<1x1x1xf32>
      %c0_25 = arith.constant 0 : index
      %51 = memref.load %arg3[%c0_25] : memref<2xf32, #tpu.memory_space<smem>>
      memref.store %41, %arg3[%c0_25] : memref<2xf32, #tpu.memory_space<smem>>
      %c1 = arith.constant 1 : index
      %52 = memref.load %arg3[%c1] : memref<2xf32, #tpu.memory_space<smem>>
      memref.store %50, %arg3[%c1] : memref<2xf32, #tpu.memory_space<smem>>
    } else {
    }
    return
  }
  func.func @transform_0(%arg0: i32) -> (i32, i32) {
    %c0_i32 = arith.constant 0 : i32
    %c0_i32_0 = arith.constant 0 : i32
    return %arg0, %c0_i32 : i32, i32
  }
  func.func @transform_1(%arg0: i32) -> (i32, i32) {
    %c0_i32 = arith.constant 0 : i32
    %c0_i32_0 = arith.constant 0 : i32
    return %arg0, %c0_i32 : i32, i32
  }
  func.func @transform_2(%arg0: i32) -> i32 {
    %c0_i32 = arith.constant 0 : i32
    %c0_i32_0 = arith.constant 0 : i32
    return %c0_i32 : i32
  }
}

</mosaic_0001>

<llo_original>
// kernel: tpu_custom_call.1
$region0: #{tpu_custom_call.1}
  #allocation0 [shape = 'u32[]', space=smem, size = 0x4, offset = 0x4, fixed_abs, tag = 'smem constant byte address 0x4 - core index']
  #allocation1 [shape = 'u32[144,128]{1,0:T(1,128)}', space=vmem, size = 0x12000, scoped, tag = 'internal scratch']
  #allocation2 [shape = 'f32[12,128]{1,0:T(8,128)}', space=vmem, size = 0x2000, scoped, tag = 'scratch operand']
  #allocation3 [shape = 'f32[12,128]{1,0:T(8,128)}', space=vmem, size = 0x2000, scoped, tag = 'scratch operand']
  %s0 = inlined_call_operand.hbm [shape: f32[12,128], index: 0, kind: input, shape index: {}]
  %s1 = inlined_call_operand.hbm [shape: f32[12,128], index: 1, kind: input, shape index: {}]
  %s2 = inlined_call_operand.hbm [shape: f32[2], index: 2, kind: output, shape index: {}]
  %s3 = sld [smem:[#allocation0]]
  $region34: #{tpu_custom_call.1} parent=0
    _
  %s5 = ssub.s32 1, %s3
  %s6 = scalar_select 0, %s5, %s3
  $region1: #{tpu_custom_call.1} parent=0
    #allocation4 [shape = 'u8[8192]{0}', space=vmem, size = 0x2000, scoped, tag = 'input window, operand 0, single buffered']
    #allocation5 [shape = 's32[1]{0}', space=sflag, size = 0x4, scoped, tag = 'scoped memory for tpu_custom_call.1']
    #allocation6 [shape = 's32[1]{0}', space=sflag, size = 0x4, scoped, tag = 'scoped memory for tpu_custom_call.1']
    #allocation7 [shape = 'u8[8192]{0}', space=vmem, size = 0x2000, scoped, tag = 'input window, operand 1, single buffered']
    #allocation8 [shape = 's32[1]{0}', space=sflag, size = 0x4, scoped, tag = 'scoped memory for tpu_custom_call.1']
    #allocation9 [shape = 'u8[512]{0}', space=smem, size = 0x200, scoped, tag = 'output window, operand 0, single buffered']
    %7 = vsyncpa [#allocation5], 0
    %8 = vsyncpa [#allocation8], 0
    %9 = vsyncpa [#allocation6], 0
    // Predicated region
    $region2: #{tpu_custom_call.1} parent=1 // pred_check
      _
    $region3: #{tpu_custom_call.1} parent=1 // pred_check_branch
      %11 = sbr.rel (0) target = $region5
    $region4: #{tpu_custom_call.1} parent=1 // pred_region
      %s13 = ssub.s32 256, 256
      %14 = vsyncadd [#allocation5], %s13
      %s15 = sshll.u32 [#allocation4], 4
      %s16 = int_to_ptr.vmem [resolvable:$true] %s15
      %21 = dma.hbm_to_vmem [thread:$0]  %s0, 256, %s16, [#allocation5], 128, 128, 8
    $region5: #{tpu_custom_call.1} parent=1 // pred_fallthru
      _
    // Predicated region
    $region6: #{tpu_custom_call.1} parent=1 // pred_check
      _
    $region7: #{tpu_custom_call.1} parent=1 // pred_check_branch
      %23 = sbr.rel (0) target = $region9
    $region8: #{tpu_custom_call.1} parent=1 // pred_region
      %s25 = ssub.s32 256, 256
      %26 = vsyncadd [#allocation8], %s25
      %s27 = sshll.u32 [#allocation7], 4
      %s28 = int_to_ptr.vmem [resolvable:$true] %s27
      %33 = dma.hbm_to_vmem [thread:$0]  %s1, 256, %s28, [#allocation8], 128, 128, 8
    $region9: #{tpu_custom_call.1} parent=1 // pred_fallthru
      _
    // Predicated region
    $region10: #{tpu_custom_call.1} parent=1 // pred_check
      _
    $region11: #{tpu_custom_call.1} parent=1 // pred_check_branch
      %35 = sbr.rel (0) target = $region13
    $region12: #{tpu_custom_call.1} parent=1 // pred_region
      %36 = dma.done [#allocation5], 256
    $region13: #{tpu_custom_call.1} parent=1 // pred_fallthru
      _
    // Predicated region
    $region14: #{tpu_custom_call.1} parent=1 // pred_check
      _
    $region15: #{tpu_custom_call.1} parent=1 // pred_check_branch
      %38 = sbr.rel (0) target = $region17
    $region16: #{tpu_custom_call.1} parent=1 // pred_region
      %39 = dma.done [#allocation8], 256
    $region17: #{tpu_custom_call.1} parent=1 // pred_fallthru
      _
    %p40 = scmp.eq.s32.totalorder 0, 0
    // Predicated region
    $region18: #{tpu_custom_call.1} parent=1 // pred_check
      %p41 = pneg %p40
    $region19: #{tpu_custom_call.1} parent=1 // pred_check_branch
      %43 = sbr.rel (%p41) target = $region21
    $region20: #{tpu_custom_call.1} parent=1 // pred_region
      %44 = vst [vmem:[#allocation2] sm:$0xff] -1e+30
      %45 = vst [vmem:[#allocation2 + $0x8] sm:$0xf] -1e+30
      %46 = vst [vmem:[#allocation3] sm:$0xff] 0.0
      %47 = vst [vmem:[#allocation3 + $0x8] sm:$0xf] 0.0
    $region21: #{tpu_custom_call.1} parent=1 // pred_fallthru
      _
    %v48 = vld [vmem:[#allocation4] sm:$0xff]
    %v49 = vld [vmem:[#allocation4 + $0x8] sm:$0xf]
    %v50 = vld [vmem:[#allocation7] sm:$0xff]
    %v51 = vld [vmem:[#allocation7 + $0x8] sm:$0xf]
    %v52 = vsub.f32 %v48, %v50
    %v53 = vsub.f32 %v49, %v51
    %v54 = vmul.f32 %v52, %v52
    %v55 = vmul.f32 %v53, %v53
    %56 = vrot.lane.b32.xlu0 %v54, 1
    %v57 = vpop.permute.xlu0 %56
    %58 = vrot.lane.b32.xlu0 %v55, 1
    %v59 = vpop.permute.xlu0 %58
    %v60 = vadd.f32 %v54, %v57
    %v61 = vadd.f32 %v55, %v59
    %v62 = vmul.f32 %v60, 2.0
    %v63 = vmul.f32 %v61, 2.0
    %v64 = vld [vmem:[#allocation2] sm:$0xff]
    %v65 = vld [vmem:[#allocation2 + $0x8] sm:$0xf]
    %v66 = vld [vmem:[#allocation3] sm:$0xff]
    %v67 = vld [vmem:[#allocation3 + $0x8] sm:$0xf]
    %v68 = vsub.f32 %v62, %v64
    %v69 = vsub.f32 %v63, %v65
    %v70 = vand.u32 2147483647, %v68
    %v71 = vand.u32 2147483647, %v69
    %v72 = vsub.f32 0.0, %v70
    %v73 = vsub.f32 0.0, %v71
    %v74 = vmul.f32 %v72, 1.442695
    %v75 = vpow.pop %v74
    %v76 = vmul.f32 %v73, 1.442695
    %v77 = vpow.pop %v76
    %v78 = vmax.f32 %v64, %v62
    %v79 = vmax.f32 %v65, %v63
    %80 = vst [vmem:[#allocation2] sm:$0xff] %v78
    %81 = vst [vmem:[#allocation2 + $0x8] sm:$0xf] %v79
    %vm82 = vcmp.gt.f32.partialorder %v62, %v64
    %vm83 = vcmp.gt.f32.partialorder %v63, %v65
    %v84 = vmul.f32 %v66, %v75
    %v85 = vmul.f32 %v67, %v77
    %v86 = vadd.f32 %v84, 1.0
    %v87 = vadd.f32 %v85, 1.0
    %v88 = vadd.f32 %v66, %v75
    %v89 = vadd.f32 %v67, %v77
    %v90 = vsel %vm82, %v86, %v88
    %v91 = vsel %vm83, %v87, %v89
    %92 = vst [vmem:[#allocation3] sm:$0xff] %v90
    %93 = vst [vmem:[#allocation3 + $0x8] sm:$0xf] %v91
    // Predicated region
    $region22: #{tpu_custom_call.1} parent=1 // pred_check
      %p94 = pneg %p40
    $region23: #{tpu_custom_call.1} parent=1 // pred_check_branch
      %96 = sbr.rel (%p94) target = $region25
    $region24: #{tpu_custom_call.1} parent=1 // pred_region
      %v97 = vlaneseq
      %v98 = vand.u32 %v97, 127
      %99 = vrot.lane.b32.xlu0 %v98, 1
      %v100 = vpop.permute.xlu0 %99
      %v101 = vxor.u32 %v98, 1
      %vm102 = vcmp.eq.s32.totalorder %v100, %v101
      %v103 = vld [vmem:[#allocation2] sm:$0xff]
      %v104 = vld [vmem:[#allocation2 + $0x8] sm:$0xf]
      %v105 = vsel %vm102, %v103, -1e+30
      %v106 = vsel %vm102, %v104, -1e+30
      %vm107 = vcmask 1043456
      %v108 = vsel %vm107, %v106, -inf
      %v109 = vmax.f32 %v105, %v108
      %110 = vmax.xlane.f32.xlu0 %v109
      %v111 = vpop.xlane.xlu0 %110
      %v112 = vrot.slane %v111, 4
      %v113 = vmax.f32 %v111, %v112
      %v114 = vrot.slane %v113, 2
      %v115 = vmax.f32 %v113, %v114
      %v116 = vrot.slane %v115, 1
      %v117 = vmax.f32 %v115, %v116
      %s118 = vtos %v117
      %v119 = vld [vmem:[#allocation3] sm:$0xff]
      %v120 = vld [vmem:[#allocation3 + $0x8] sm:$0xf]
      %v121 = vstv %s118
      %v122 = vsub.f32 %v105, %v121
      %v123 = vsub.f32 %v106, %v121
      %v124 = vmul.f32 %v122, 1.442695
      %v125 = vpow.pop %v124
      %v126 = vmul.f32 %v123, 1.442695
      %v127 = vpow.pop %v126
      %v128 = vmul.f32 %v119, %v125
      %v129 = vmul.f32 %v120, %v127
      %v130 = vsel %vm107, %v129, 0.0
      %v131 = vadd.f32 %v128, %v130
      %132 = vadd.xlane.f32.xlu0 %v131
      %v133 = vpop.xlane.xlu0 %132
      %v134 = vrot.slane %v133, 4
      %v135 = vadd.f32 %v133, %v134
      %v136 = vrot.slane %v135, 2
      %v137 = vadd.f32 %v135, %v136
      %v138 = vrot.slane %v137, 1
      %v139 = vadd.f32 %v137, %v138
      %s140 = vtos %v139
      %s141 = scalar_lea.smem [#allocation9], 0
      %142 = sst [smem:[%s141]] %s118
      %s143 = scalar_lea.smem [#allocation9], 1
      %144 = sst [smem:[%s143]] %s140
    $region25: #{tpu_custom_call.1} parent=1 // pred_fallthru
      _
    // Predicated region
    $region26: #{tpu_custom_call.1} parent=1 // pred_check
      _
    $region27: #{tpu_custom_call.1} parent=1 // pred_check_branch
      %146 = sbr.rel (0) target = $region29
    $region28: #{tpu_custom_call.1} parent=1 // pred_region
      %s148 = ssub.s32 16, 16
      %149 = vsyncadd [#allocation6], %s148
      %152 = dma.smem_to_hbm [#allocation9], 16, %s2, [#allocation6]
    $region29: #{tpu_custom_call.1} parent=1 // pred_fallthru
      _
    // Predicated region
    $region30: #{tpu_custom_call.1} parent=1 // pred_check
      _
    $region31: #{tpu_custom_call.1} parent=1 // pred_check_branch
      %154 = sbr.rel (0) target = $region33
    $region32: #{tpu_custom_call.1} parent=1 // pred_region
      %155 = dma.done [#allocation6], 16
    $region33: #{tpu_custom_call.1} parent=1 // pred_fallthru
      _
    %156 = sfence
    %157 = vsyncpa [#allocation5], 1
    %158 = vsyncpa [#allocation8], 1
    %159 = vsyncpa [#allocation6], 1

</llo_original>
